<compile_context>
chip_gen: v5e
topology: v5e:2x2
jax: 0.10.0
libtpu: 0.0.40
codegen_flags: <defaults>
</compile_context>

<pallas_src>
import functools

import jax
import jax.numpy as jnp
from jax.experimental import pallas as pl
from jax.experimental.pallas import tpu as pltpu

NEG_SLOPE = 0.01  # F.leaky_relu default


def _leaky(x):
    return jnp.where(x > 0, x, NEG_SLOPE * x)


def _round_up(v, m):
    return ((v + m - 1) // m) * m


# --------------------------------------------------------------------------- #
# Pass 1: support = x @ Wgc  (one MXU matmul per node tile, bf16 output)
# --------------------------------------------------------------------------- #
def _support_kernel(x_ref, wgc_ref, s_ref):
    s_ref[...] = jnp.dot(
        x_ref[...], wgc_ref[...], preferred_element_type=jnp.float32
    ).astype(s_ref.dtype)


# --------------------------------------------------------------------------- #
# Pass 2: h = dropout(leaky(leaky(adj @ support + bgc) @ W1 + b1))
# --------------------------------------------------------------------------- #
def _mic_kernel(adj_ref, s_ref, bgc_ref, w1_ref, b1_ref, mask_ref,
                h_ref, acc_ref, *, inv_keep):
    """One (node-tile i, contraction-tile k) grid step."""
    k = pl.program_id(1)

    @pl.when(k == 0)
    def _init():
        acc_ref[...] = jnp.zeros_like(acc_ref)

    # Stream adj tiles; accumulate (adj @ support) in f32.
    acc_ref[...] += jnp.dot(adj_ref[...], s_ref[...],
                            preferred_element_type=jnp.float32)

    @pl.when(k == pl.num_programs(1) - 1)
    def _finalize():
        # GCN bias + activation (f32 elementwise).
        h1 = _leaky(acc_ref[...] + bgc_ref[...])
        # linear1 (bf16 MXU operands, f32 accumulate) + activation.
        z = jnp.dot(h1.astype(w1_ref.dtype), w1_ref[...],
                    preferred_element_type=jnp.float32) + b1_ref[...]
        h2 = _leaky(z)
        # Fused dropout: bf16 {0,1} keep-mask, exact f32 1/(1-p) scale.
        h_ref[...] = h2 * (inv_keep * mask_ref[...].astype(jnp.float32))


def mic_predictor_forward(x, adj, params, *, dropout_p, seed,
                          mxu_dtype=jnp.bfloat16):
    """Runs the MICPredictor forward pass; returns (scalar pred, hidden h)."""
    n_nodes, n_feat = x.shape
    n_hid_1 = params["wgc"].shape[1]
    n_hid_2 = params["w1"].shape[1]

    # ---- lane-dense padding of the feature/hidden dims ----------------------
    f_pad = _round_up(n_feat, 128)
    h1_pad = _round_up(n_hid_1, 128)
    h2_pad = _round_up(n_hid_2, 128)

    # ---- node-axis tiling ----------------------------------------------------
    if n_nodes <= 256:
        blk = _round_up(n_nodes, 8)          # single tile, full-dim blocks
        n_pad = blk
    else:
        blk = 256                            # multiple of (8, 128) -> legal tiles
        n_pad = _round_up(n_nodes, blk)
    n_i = n_pad // blk
    n_k = n_pad // blk

    def pad2(a, rows, cols, dtype):
        a = jnp.asarray(a, jnp.float32)
        a = jnp.pad(a, ((0, rows - a.shape[0]), (0, cols - a.shape[1])))
        return a.astype(dtype)

    xp = pad2(x, n_pad, f_pad, mxu_dtype)
    adjp = pad2(adj, n_pad, n_pad, mxu_dtype)
    wgcp = pad2(params["wgc"], f_pad, h1_pad, mxu_dtype)
    bgcp = pad2(params["bgc"], 1, h1_pad, jnp.float32)
    w1p = pad2(params["w1"], h1_pad, h2_pad, mxu_dtype)
    b1p = pad2(params["b1"], 1, h2_pad, jnp.float32)

    # ---- dropout keep-mask {0,1} (bf16), scale applied in-kernel --------------
    if dropout_p >= 1.0:
        mask = jnp.zeros((n_pad, h2_pad), mxu_dtype)
        inv_keep = 1.0
    elif dropout_p <= 0.0:
        mask = jnp.ones((n_pad, h2_pad), mxu_dtype)
        inv_keep = 1.0
    else:
        keep = 1.0 - float(dropout_p)
        key = jax.random.PRNGKey(seed)
        mask = jax.random.bernoulli(key, keep, (n_pad, h2_pad)).astype(mxu_dtype)
        inv_keep = 1.0 / keep

    bpe = jnp.dtype(mxu_dtype).itemsize

    # ---- pass 1: support = x @ Wgc -------------------------------------------
    sup_vmem = 2 * (blk * f_pad + f_pad * h1_pad + blk * h1_pad) * bpe + (1 << 20)
    sup_vmem = int(min(max(sup_vmem, 16 * 1024 * 1024), 48 * 1024 * 1024))
    support = pl.pallas_call(
        _support_kernel,
        out_shape=jax.ShapeDtypeStruct((n_pad, h1_pad), mxu_dtype),
        grid=(n_i,),
        in_specs=[
            pl.BlockSpec((blk, f_pad), lambda i: (i, 0)),        # x
            pl.BlockSpec((f_pad, h1_pad), lambda i: (0, 0)),     # Wgc
        ],
        out_specs=pl.BlockSpec((blk, h1_pad), lambda i: (i, 0)),
        compiler_params=pltpu.CompilerParams(
            dimension_semantics=("parallel",),
            vmem_limit_bytes=sup_vmem,
        ),
    )(xp, wgcp)

    # ---- pass 2: fused GCN aggregate + linear1 + dropout ----------------------
    tile_bytes = (
        2 * (blk * blk * bpe          # adj tile
             + blk * h1_pad * bpe     # support tile
             + blk * h2_pad * bpe     # mask tile (bf16)
             + blk * h2_pad * 4)      # h output tile (f32)
        + 2 * h1_pad * h2_pad * bpe   # W1
        + 2 * (h1_pad + h2_pad) * 4   # biases
        + blk * h1_pad * 4            # accumulator scratch
    )
    vmem_limit = int(min(max(2 * tile_bytes, 16 * 1024 * 1024), 48 * 1024 * 1024))

    kernel = functools.partial(_mic_kernel, inv_keep=float(inv_keep))
    h_pad_arr = pl.pallas_call(
        kernel,
        out_shape=jax.ShapeDtypeStruct((n_pad, h2_pad), jnp.float32),
        grid=(n_i, n_k),
        in_specs=[
            pl.BlockSpec((blk, blk), lambda i, k: (i, k)),        # adj
            pl.BlockSpec((blk, h1_pad), lambda i, k: (k, 0)),     # support
            pl.BlockSpec((1, h1_pad), lambda i, k: (0, 0)),       # bgc
            pl.BlockSpec((h1_pad, h2_pad), lambda i, k: (0, 0)),  # W1
            pl.BlockSpec((1, h2_pad), lambda i, k: (0, 0)),       # b1
            pl.BlockSpec((blk, h2_pad), lambda i, k: (i, 0)),     # dropout mask
        ],
        out_specs=pl.BlockSpec((blk, h2_pad), lambda i, k: (i, 0)),
        scratch_shapes=[pltpu.VMEM((blk, h1_pad), jnp.float32)],
        compiler_params=pltpu.CompilerParams(
            dimension_semantics=("parallel", "arbitrary"),
            vmem_limit_bytes=vmem_limit,
        ),
    )(adjp, support, bgcp, w1p, b1p, mask)

    h = h_pad_arr[:n_nodes, :n_hid_2]

    # Scalar head: only linear2(h)[0][0] is consumed -> single n_hid_2-length dot.
    w2_col = jnp.asarray(params["w2"], jnp.float32)[:, 0]
    b2_00 = jnp.asarray(params["b2"], jnp.float32)[0, 0]
    pred = _leaky(jnp.dot(h[0], w2_col) + b2_00)
    return pred, h


def init_params(key, n_feat, n_hid_1, n_hid_2, out_dim):
    k = jax.random.split(key, 6)
    scale = 0.1
    return {
        # GraphConvolutionPerNode weight/bias (stored as (in, out))
        "wgc": scale * jax.random.normal(k[0], (n_feat, n_hid_1), jnp.float32),
        "bgc": scale * jax.random.normal(k[1], (1, n_hid_1), jnp.float32),
        # linear1
        "w1": scale * jax.random.normal(k[2], (n_hid_1, n_hid_2), jnp.float32),
        "b1": scale * jax.random.normal(k[3], (1, n_hid_2), jnp.float32),
        # linear2 (n_hid_3=None path: maps n_hid_2 -> out_dim)
        "w2": scale * jax.random.normal(k[4], (n_hid_2, out_dim), jnp.float32),
        "b2": scale * jax.random.normal(k[5], (1, out_dim), jnp.float32),
    }


if __name__ == "__main__":
    # Small, module-consistent shapes.
    N_NODES, N_FEAT, N_HID_1, N_HID_2, OUT_DIM = 8, 16, 32, 32, 4
    DROPOUT = 0.5

    key = jax.random.PRNGKey(0)
    kx, kadj, kp = jax.random.split(key, 3)

    x = jax.random.normal(kx, (N_NODES, N_FEAT), jnp.float32)
    # symmetric, roughly row-normalized dense adjacency
    a = jax.random.uniform(kadj, (N_NODES, N_NODES), jnp.float32)
    adj = (a + a.T) / (2.0 * N_NODES)

    params = init_params(kp, N_FEAT, N_HID_1, N_HID_2, OUT_DIM)

    pred, h = mic_predictor_forward(x, adj, params, dropout_p=DROPOUT, seed=1234)
    jax.block_until_ready((pred, h))

    assert pred.shape == ()
    assert h.shape == (N_NODES, N_HID_2)
    print("KERNEL_OK")
</pallas_src>

<mosaic_0001>
module attributes {stable_mosaic.version = 11 : i64} {
  func.func @_support_kernel(%arg0: i32, %arg1: memref<8x128xbf16, #tpu.memory_space<vmem>>, %arg2: memref<128x128xbf16, #tpu.memory_space<vmem>>, %arg3: memref<8x128xbf16, #tpu.memory_space<vmem>>) attributes {dimension_semantics = [#tpu.dimension_semantics<parallel>], iteration_bounds = array<i64: 1>, scalar_prefetch = 0 : i64, scratch_operands = 0 : i64, tpu.core_type = #tpu.core_type<tc>, window_params = [{transform_indices = @transform_0, window_bounds = array<i64: 8, 128>}, {pipeline_mode = #tpu.pipeline_mode<synchronous>, transform_indices = @transform_1, window_bounds = array<i64: 128, 128>}, {transform_indices = @transform_2, window_bounds = array<i64: 8, 128>}]} {
    %c0 = arith.constant 0 : index
    %c0_0 = arith.constant 0 : index
    %0 = vector.load %arg1[%c0, %c0_0] : memref<8x128xbf16, #tpu.memory_space<vmem>>, vector<8x128xbf16>
    %c0_1 = arith.constant 0 : index
    %c0_2 = arith.constant 0 : index
    %1 = vector.load %arg2[%c0_1, %c0_2] : memref<128x128xbf16, #tpu.memory_space<vmem>>, vector<128x128xbf16>
    %cst = arith.constant dense<0.000000e+00> : vector<8x128xf32>
    %2 = tpu.matmul %0, %1, %cst {dimension_numbers = #tpu.dot_dimension_numbers<[1], [0], [0], [1], [0, 0, 1, 1], [], []>} : vector<8x128xbf16>, vector<128x128xbf16>, vector<8x128xf32> -> vector<8x128xf32>
    %3 = arith.truncf %2 : vector<8x128xf32> to vector<8x128xbf16>
    %c0_3 = arith.constant 0 : index
    %c0_4 = arith.constant 0 : index
    %4 = vector.load %arg3[%c0_3, %c0_4] : memref<8x128xbf16, #tpu.memory_space<vmem>>, vector<8x128xbf16>
    tpu.vector_store %arg3[%c0_3, %c0_4], %3 {strides = array<i32>} : memref<8x128xbf16, #tpu.memory_space<vmem>>, vector<8x128xbf16>,
    return
  }
  func.func @transform_0(%arg0: i32) -> (i32, i32) {
    %c0_i32 = arith.constant 0 : i32
    %c0_i32_0 = arith.constant 0 : i32
    return %arg0, %c0_i32 : i32, i32
  }
  func.func @transform_1(%arg0: i32) -> (i32, i32) {
    %c0_i32 = arith.constant 0 : i32
    %c0_i32_0 = arith.constant 0 : i32
    %c0_i32_1 = arith.constant 0 : i32
    return %c0_i32, %c0_i32_0 : i32, i32
  }
  func.func @transform_2(%arg0: i32) -> (i32, i32) {
    %c0_i32 = arith.constant 0 : i32
    %c0_i32_0 = arith.constant 0 : i32
    return %arg0, %c0_i32 : i32, i32
  }
}

</mosaic_0001>

<llo_original>
// kernel: tpu_custom_call.1
$region0: #{tpu_custom_call.1}
  #allocation0 [shape = 'u32[]', space=smem, size = 0x4, offset = 0x4, fixed_abs, tag = 'smem constant byte address 0x4 - core index']
  #allocation1 [shape = 'u32[72,128]{1,0:T(1,128)}', space=vmem, size = 0x9000, scoped, tag = 'internal scratch']
  %s0 = inlined_call_operand.hbm [shape: bf16[8,128], index: 0, kind: input, shape index: {}]
  %s1 = inlined_call_operand.hbm [shape: bf16[128,128], index: 1, kind: input, shape index: {}]
  %s2 = inlined_call_operand.hbm [shape: bf16[8,128], index: 2, kind: output, shape index: {}]
  %s3 = sld [smem:[#allocation0]]
  $region26: #{tpu_custom_call.1} parent=0
    _
  %s5 = ssub.s32 1, %s3
  %s6 = scalar_select 0, %s5, %s3
  $region1: #{tpu_custom_call.1} parent=0
    #allocation2 [shape = 'u8[2048]{0}', space=vmem, size = 0x800, scoped, tag = 'input window, operand 0, single buffered']
    #allocation3 [shape = 's32[1]{0}', space=sflag, size = 0x4, scoped, tag = 'scoped memory for tpu_custom_call.1']
    #allocation4 [shape = 's32[1]{0}', space=sflag, size = 0x4, scoped, tag = 'scoped memory for tpu_custom_call.1']
    #allocation5 [shape = 'u8[32768]{0}', space=vmem, size = 0x8000, scoped, tag = 'input window, operand 1, single buffered']
    #allocation6 [shape = 's32[1]{0}', space=sflag, size = 0x4, scoped, tag = 'scoped memory for tpu_custom_call.1']
    #allocation7 [shape = 'u8[2048]{0}', space=vmem, size = 0x800, scoped, tag = 'output window, operand 0, single buffered']
    %7 = vsyncpa [#allocation3], 0
    %8 = vsyncpa [#allocation6], 0
    %9 = vsyncpa [#allocation4], 0
    // Predicated region
    $region2: #{tpu_custom_call.1} parent=1 // pred_check
      _
    $region3: #{tpu_custom_call.1} parent=1 // pred_check_branch
      %11 = sbr.rel (0) target = $region5
    $region4: #{tpu_custom_call.1} parent=1 // pred_region
      %13 = vsyncadd [#allocation3], 0
      %s15 = sshll.u32 %s0, 4
      %s16 = int_to_ptr.hbm [resolvable:$true] %s15
      %s17 = sshll.u32 [#allocation2], 4
      %s18 = int_to_ptr.vmem [resolvable:$true] %s17
      %20 = dma.hbm_to_vmem [thread:$0]  %s16, 64, %s18, [#allocation3]
    $region5: #{tpu_custom_call.1} parent=1 // pred_fallthru
      _
    // Predicated region
    $region6: #{tpu_custom_call.1} parent=1 // pred_check
      _
    $region7: #{tpu_custom_call.1} parent=1 // pred_check_branch
      %22 = sbr.rel (0) target = $region9
    $region8: #{tpu_custom_call.1} parent=1 // pred_region
      %24 = vsyncadd [#allocation6], 0
      %s25 = sshll.u32 %s1, 4
      %s26 = int_to_ptr.hbm [resolvable:$true] %s25
      %s27 = sshll.u32 [#allocation5], 4
      %s28 = int_to_ptr.vmem [resolvable:$true] %s27
      %33 = dma.hbm_to_vmem [thread:$0]  %s26, 1024, %s28, [#allocation6], 64, 64, 4
    $region9: #{tpu_custom_call.1} parent=1 // pred_fallthru
      _
    // Predicated region
    $region10: #{tpu_custom_call.1} parent=1 // pred_check
      _
    $region11: #{tpu_custom_call.1} parent=1 // pred_check_branch
      %35 = sbr.rel (0) target = $region13
    $region12: #{tpu_custom_call.1} parent=1 // pred_region
      %37 = dma.done [#allocation3], 64
    $region13: #{tpu_custom_call.1} parent=1 // pred_fallthru
      _
    // Predicated region
    $region14: #{tpu_custom_call.1} parent=1 // pred_check
      _
    $region15: #{tpu_custom_call.1} parent=1 // pred_check_branch
      %39 = sbr.rel (0) target = $region17
    $region16: #{tpu_custom_call.1} parent=1 // pred_region
      %41 = dma.done [#allocation6], 1024
    $region17: #{tpu_custom_call.1} parent=1 // pred_fallthru
      _
    %v42 = vld [vmem:[#allocation2] sm:$0xf]
    %v43 = vld [vmem:[#allocation5] sm:$0xf]
    %v44 = vld [vmem:[#allocation5 + $0x4] sm:$0xf]
    %v45 = vld [vmem:[#allocation5 + $0x8] sm:$0xf]
    %v46 = vld [vmem:[#allocation5 + $0xc] sm:$0xf]
    %v47 = vld [vmem:[#allocation5 + $0x10] sm:$0xf]
    %v48 = vld [vmem:[#allocation5 + $0x14] sm:$0xf]
    %v49 = vld [vmem:[#allocation5 + $0x18] sm:$0xf]
    %v50 = vld [vmem:[#allocation5 + $0x1c] sm:$0xf]
    %v51 = vld [vmem:[#allocation5 + $0x20] sm:$0xf]
    %v52 = vld [vmem:[#allocation5 + $0x24] sm:$0xf]
    %v53 = vld [vmem:[#allocation5 + $0x28] sm:$0xf]
    %v54 = vld [vmem:[#allocation5 + $0x2c] sm:$0xf]
    %v55 = vld [vmem:[#allocation5 + $0x30] sm:$0xf]
    %v56 = vld [vmem:[#allocation5 + $0x34] sm:$0xf]
    %v57 = vld [vmem:[#allocation5 + $0x38] sm:$0xf]
    %v58 = vld [vmem:[#allocation5 + $0x3c] sm:$0xf]
    %v75 = vunpack.c.l.b16 %v43
    %v76 = vunpack.c.l.b16 %v44
    %v77 = vunpack.c.l.b16 %v45
    %v78 = vunpack.c.l.b16 %v46
    %v79 = vunpack.c.l.b16 %v47
    %v80 = vunpack.c.l.b16 %v48
    %v81 = vunpack.c.l.b16 %v49
    %v82 = vunpack.c.l.b16 %v50
    %v83 = vunpack.c.l.b16 %v51
    %v84 = vunpack.c.l.b16 %v52
    %v85 = vunpack.c.l.b16 %v53
    %v86 = vunpack.c.l.b16 %v54
    %v87 = vunpack.c.l.b16 %v55
    %v88 = vunpack.c.l.b16 %v56
    %v89 = vunpack.c.l.b16 %v57
    %v90 = vunpack.c.l.b16 %v58
    %v91 = vpack.c.b16 %v76, %v75
    %v92 = vpack.c.b16 %v78, %v77
    %v93 = vpack.c.b16 %v80, %v79
    %v94 = vpack.c.b16 %v82, %v81
    %v95 = vpack.c.b16 %v84, %v83
    %v96 = vpack.c.b16 %v86, %v85
    %v97 = vpack.c.b16 %v88, %v87
    %v98 = vpack.c.b16 %v90, %v89
    %107 = vmatpush.bf16.msra.mxu0 %v98
    %108 = vmatpush.bf16.msra.mxu0 %v97
    %109 = vmatpush.bf16.msra.mxu0 %v96
    %110 = vmatpush.bf16.msra.mxu0 %v95
    %111 = vmatpush.bf16.msra.mxu0 %v94
    %112 = vmatpush.bf16.msra.mxu0 %v93
    %113 = vmatpush.bf16.msra.mxu0 %v92
    %114 = vmatpush.bf16.msra.mxu0 %v91
    %115 = vmatmul.bf16.gmra.mxu0 %v42
    %v116 = vpop.f32.mrf.mxu0
    %v117 = vadd.f32 0.0, %v116
    %v118 = vpop.f32.mrf.mxu0
    %119 = vdwg.mxu0
    %v120 = vpack.c.bf16 %v117, %v117
    %121 = vst [vmem:[#allocation7] sm:$0xf] %v120
    // Predicated region
    $region18: #{tpu_custom_call.1} parent=1 // pred_check
      _
    $region19: #{tpu_custom_call.1} parent=1 // pred_check_branch
      %123 = sbr.rel (0) target = $region21
    $region20: #{tpu_custom_call.1} parent=1 // pred_region
      %125 = vsyncadd [#allocation4], 0
      %s127 = sshll.u32 [#allocation7], 4
      %s128 = int_to_ptr.vmem [resolvable:$true] %s127
      %s129 = sshll.u32 %s2, 4
      %s130 = int_to_ptr.hbm [resolvable:$true] %s129
      %132 = dma.vmem_to_hbm [thread:$0]  %s128, 64, %s130, [#allocation4]
    $region21: #{tpu_custom_call.1} parent=1 // pred_fallthru
      _
    // Predicated region
    $region22: #{tpu_custom_call.1} parent=1 // pred_check
      _
    $region23: #{tpu_custom_call.1} parent=1 // pred_check_branch
      %134 = sbr.rel (0) target = $region25
    $region24: #{tpu_custom_call.1} parent=1 // pred_region
      %136 = dma.done [#allocation4], 64
    $region25: #{tpu_custom_call.1} parent=1 // pred_fallthru
      _
    %137 = vsyncpa [#allocation3], 1
    %138 = vsyncpa [#allocation6], 1
    %139 = vsyncpa [#allocation4], 1

</llo_original>
